<compile_context>
chip_gen: v7x
topology: tpu7x:2x2x1
jax: 0.10.0
libtpu: 0.0.40
codegen_flags: <defaults>
</compile_context>

<pallas_src>
import functools

import jax
import jax.numpy as jnp
from jax.experimental import pallas as pl
from jax.experimental.pallas import tpu as pltpu

PATCH = 3
PAD = PATCH // 2  # = 1


def _norm(u):
    # loc_diff_norm: u / sqrt(0.81 + u^2) via EUP rsqrt (free slot).
    return u * jax.lax.rsqrt(0.81 + u * u)


def geometry_kernel(x_ref, y_ref, out_ref, *, true_h, true_w):
    """Partial sum of dist*mask for one (batch, channel-block) tile.

    Mirror-tap identity: for tap offset (oy, ox) and its mirror (-oy, -ox),
    loc_diff flips sign, the norm is odd and the squared diff is even, so the
    mirror tap's per-pixel value at (i+oy, j+ox) equals the original tap's
    value at (i, j).  Hence each of the 4 mirror pairs is evaluated once over
    the full (rolled) plane and weighted by
        interior_mask(i, j) + interior_mask(i+oy, j+ox),
    which exactly reproduces both interior sums (padded / wrapped positions
    get weight 0, so roll wrap-around and the wrapper's zero padding are
    harmless).  The centre tap is identically zero and is skipped.
    """
    _, tc, hp, wp = x_ref.shape
    f32 = jnp.float32

    xv = x_ref[...]
    yv = y_ref[...]
    # Centre pixels in f32 (no-op for f32 inputs; the bf16 upcast is counted
    # in the wrapper's VMEM budget).  Rolled views are upcast per use.
    xc = xv.astype(f32)
    yc = yv.astype(f32)

    # Hoisted skinny row / column indices + interior indicators (true dims).
    ri = jax.lax.broadcasted_iota(jnp.int32, (1, 1, hp, 1), 2)
    ci = jax.lax.broadcasted_iota(jnp.int32, (1, 1, 1, wp), 3)
    row_int = ((ri >= PAD) & (ri < true_h - PAD)).astype(f32)
    col_int = ((ci >= PAD) & (ci < true_w - PAD)).astype(f32)

    def pair_weight(oy, ox):
        # interior + interior shifted by (oy, ox): exact mirror-tap counting.
        row_s = ((ri >= PAD - oy) & (ri < true_h - PAD - oy)).astype(f32)
        col_s = ((ci >= PAD - ox) & (ci < true_w - PAD - ox)).astype(f32)
        return row_int * col_int + row_s * col_s

    def pair_value(xs, ys):
        ldx = xs.astype(f32) - xc
        ldy = ys.astype(f32) - yc
        d = _norm(ldx) - _norm(ldy)
        d2 = d * d
        a = d2 + 0.1
        # Approx EUP reciprocal + one Newton step (rel err ~ rel0^2 << 1e-5),
        # far cheaper than the exact divide chain on the co-saturated VPU.
        r = pl.reciprocal(a, approx=True)
        r = r * (2.0 - a * r)
        return d2 * r                      # = d2 / (0.1 + d2)

    # Row-rolled (oy = -1) views are shared by three of the four pairs.
    # pltpu.roll(x, s, ax)[i] = x[(i - s) mod n]  =>  shift = (-offset) mod n.
    xu = pltpu.roll(xv, 1, 2)              # xu[i, j] = x[i-1, j]
    yu = pltpu.roll(yv, 1, 2)

    # pair (-1, 0): up <-> down
    total = jnp.sum(pair_value(xu, yu) * pair_weight(-1, 0))
    # pair (-1, -1): up-left <-> down-right
    total += jnp.sum(pair_value(pltpu.roll(xu, 1, 3),
                                pltpu.roll(yu, 1, 3)) * pair_weight(-1, -1))
    # pair (-1, +1): up-right <-> down-left
    total += jnp.sum(pair_value(pltpu.roll(xu, wp - 1, 3),
                                pltpu.roll(yu, wp - 1, 3)) * pair_weight(-1, 1))
    # pair (0, -1): left <-> right
    total += jnp.sum(pair_value(pltpu.roll(xv, 1, 3),
                                pltpu.roll(yv, 1, 3)) * pair_weight(0, -1))

    out_ref[...] = jnp.full((1, 1, 1, 128), total, f32)


def _tpu_vmem_capacity_bytes():
    try:
        cap = getattr(pltpu.get_tpu_info(), "vmem_capacity_bytes", None)
        if cap:
            return int(cap)
    except Exception:
        pass
    return 64 * 1024 * 1024  # conservative default (v7x per-core VMEM)


def _pick_channel_tile(c, hp, wp, in_itemsize, vmem_cap):
    """Largest channel tile dividing C whose LIVE footprint fits the budget.

    live = 2 inputs x 2 pipeline buffers (native dtype) + ~7 block-sized f32
    temporaries (upcast centres, rolled views, loc-diff / norm / value chains
    Mosaic materializes).  Budget is generation-aware (~1/3 of VMEM), i.e.
    ~4 MiB input blocks on 128 MiB parts vs ~2 MiB on 64 MiB (v7x).
    """
    plane = hp * wp

    def live_bytes(tc):
        return tc * plane * (2 * 2 * in_itemsize + 7 * 4)

    budget = max(vmem_cap // 3, 4 * 1024 * 1024)
    tc = 1
    for cand in range(1, c + 1):
        if c % cand == 0 and live_bytes(cand) <= budget:
            tc = cand
    return tc, live_bytes(tc)


@jax.jit
def geometry_loss(x, y):
    """Geometry.forward(x, y); x, y: (B, C, H, W), float32 or bfloat16."""
    b, c, h, w = x.shape
    itemsize = jnp.dtype(x.dtype).itemsize

    # Pad spatial dims to native (sublane=8, lane=128) multiples so in-kernel
    # XLU rotates and stores stay aligned; padded rows/cols get zero weight
    # from the in-kernel masks.  No-op for already-aligned (e.g. HD) frames.
    hp = -(-h // 8) * 8
    wp = -(-w // 128) * 128
    if (hp, wp) != (h, w):
        spad = ((0, 0), (0, 0), (0, hp - h), (0, wp - w))
        x = jnp.pad(x, spad)
        y = jnp.pad(y, spad)

    vmem_cap = _tpu_vmem_capacity_bytes()
    tc, live = _pick_channel_tile(c, hp, wp, itemsize, vmem_cap)
    vmem_limit = int(min(vmem_cap - (2 << 20), max(32 << 20, 2 * live)))
    grid = (b, c // tc)

    # TODO(synk): row-tile over H with a +/-PAD halo (manual DMA or Element
    # offsets) for frames where even tc=1 exceeds the VMEM budget (HD on v7x).

    elems = b * c * hp * wp
    cost = pl.CostEstimate(
        flops=4 * 24 * elems,                 # 4 mirror pairs, ~24 VPU ops/elem
        transcendentals=4 * 3 * elems,        # 2 rsqrt + 1 rcp per pair
        bytes_accessed=2 * elems * itemsize + b * (c // tc) * 128 * 4,
    )

    kernel = functools.partial(geometry_kernel, true_h=h, true_w=w)
    partials = pl.pallas_call(
        kernel,
        out_shape=jax.ShapeDtypeStruct((b, c // tc, 1, 128), jnp.float32),
        grid=grid,
        in_specs=[
            pl.BlockSpec((1, tc, hp, wp), lambda i, j: (i, j, 0, 0)),
            pl.BlockSpec((1, tc, hp, wp), lambda i, j: (i, j, 0, 0)),
        ],
        out_specs=pl.BlockSpec((1, 1, 1, 128), lambda i, j: (i, j, 0, 0)),
        compiler_params=pltpu.CompilerParams(
            dimension_semantics=("parallel", "parallel"),
            vmem_limit_bytes=vmem_limit),
        cost_estimate=cost,
    )(x, y)

    # Final (tiny) reduction: mean over the C*9 "channel" dim (zero centre
    # taps still count in the denominator) and mean over (B, 1, H, W) with the
    # border mask == interior-only sum / (B*H*W*C*9), using TRUE dims.
    denom = b * h * w * c * PATCH * PATCH
    return jnp.sum(partials[:, :, 0, 0]) / denom


def _reference(x, y):
    # Pure-JAX reference mirroring the PyTorch module (identity conv weight).
    oc = PATCH * PATCH
    wgt = jnp.transpose(
        jnp.eye(oc, dtype=jnp.float32).reshape(PATCH, PATCH, 1, oc),
        (3, 2, 0, 1))  # (O, I, kH, kW)

    def transform(t):
        b, c, h, wd = t.shape
        t_ = t.reshape(b * c, 1, h, wd)
        patches = jax.lax.conv_general_dilated(
            t_, wgt, window_strides=(1, 1),
            padding=[(PAD, PAD), (PAD, PAD)],
            dimension_numbers=('NCHW', 'OIHW', 'NCHW'))
        ld = patches - t_
        ld = ld.reshape(b, c * oc, h, wd)
        return ld / jnp.sqrt(0.81 + ld ** 2)

    diff = transform(x) - transform(y)
    dist = jnp.mean(diff ** 2 / (0.1 + diff ** 2), axis=1, keepdims=True)
    b, c, h, wd = x.shape
    inner = jnp.ones((b, 1, h - 2 * PAD, wd - 2 * PAD), jnp.float32)
    mask = jnp.pad(inner, ((0, 0), (0, 0), (PAD, PAD), (PAD, PAD)))
    return jnp.mean(dist * mask)


if __name__ == "__main__":
    key = jax.random.PRNGKey(0)
    kx, ky = jax.random.split(key)
    # small NCHW shapes consistent with the module's forward
    x = jax.random.normal(kx, (2, 4, 16, 16), dtype=jnp.float32)
    y = jax.random.normal(ky, (2, 4, 16, 16), dtype=jnp.float32)

    loss = geometry_loss(x, y)
    jax.block_until_ready(loss)

    ref = _reference(x.astype(jnp.float32), y.astype(jnp.float32))
    assert jnp.allclose(loss, ref, atol=1e-5, rtol=1e-5), (loss, ref)
    print("KERNEL_OK")
</pallas_src>

<mosaic_0001>
module attributes {stable_mosaic.version = 11 : i64} {
  func.func @geometry_kernel(%arg0: i32, %arg1: i32, %arg2: memref<1x4x16x128xf32, #tpu.memory_space<vmem>>, %arg3: memref<1x4x16x128xf32, #tpu.memory_space<vmem>>, %arg4: memref<1x1x1x128xf32, #tpu.memory_space<vmem>>) attributes {dimension_semantics = [#tpu.dimension_semantics<parallel>, #tpu.dimension_semantics<parallel>], iteration_bounds = array<i64: 2, 1>, scalar_prefetch = 0 : i64, scratch_operands = 0 : i64, tpu.core_type = #tpu.core_type<tc>, window_params = [{transform_indices = @transform_0, window_bounds = array<i64: 1, 4, 16, 128>}, {transform_indices = @transform_1, window_bounds = array<i64: 1, 4, 16, 128>}, {transform_indices = @transform_2, window_bounds = array<i64: 1, 1, 1, 128>}]} {
    %c0 = arith.constant 0 : index
    %c0_0 = arith.constant 0 : index
    %c0_1 = arith.constant 0 : index
    %c0_2 = arith.constant 0 : index
    %0 = vector.load %arg2[%c0, %c0_0, %c0_1, %c0_2] : memref<1x4x16x128xf32, #tpu.memory_space<vmem>>, vector<1x4x16x128xf32>
    %c0_3 = arith.constant 0 : index
    %c0_4 = arith.constant 0 : index
    %c0_5 = arith.constant 0 : index
    %c0_6 = arith.constant 0 : index
    %1 = vector.load %arg3[%c0_3, %c0_4, %c0_5, %c0_6] : memref<1x4x16x128xf32, #tpu.memory_space<vmem>>, vector<1x4x16x128xf32>
    %2 = tpu.iota {dimensions = array<i32: 2>} : vector<1x1x16x1xi32>
    %3 = tpu.iota {dimensions = array<i32: 3>} : vector<1x1x1x128xi32>
    %c1_i32 = arith.constant 1 : i32
    %4 = vector.broadcast %c1_i32 : i32 to vector<1x1x16x1xi32>
    %5 = arith.cmpi sge, %2, %4 : vector<1x1x16x1xi32>
    %c15_i32 = arith.constant 15 : i32
    %6 = vector.broadcast %c15_i32 : i32 to vector<1x1x16x1xi32>
    %7 = arith.cmpi slt, %2, %6 : vector<1x1x16x1xi32>
    %8 = arith.andi %5, %7 : vector<1x1x16x1xi1>
    %9 = arith.extui %8 : vector<1x1x16x1xi1> to vector<1x1x16x1xi32>
    %10 = arith.sitofp %9 : vector<1x1x16x1xi32> to vector<1x1x16x1xf32>
    %c1_i32_7 = arith.constant 1 : i32
    %11 = vector.broadcast %c1_i32_7 : i32 to vector<1x1x1x128xi32>
    %12 = arith.cmpi sge, %3, %11 : vector<1x1x1x128xi32>
    %c15_i32_8 = arith.constant 15 : i32
    %13 = vector.broadcast %c15_i32_8 : i32 to vector<1x1x1x128xi32>
    %14 = arith.cmpi slt, %3, %13 : vector<1x1x1x128xi32>
    %15 = arith.andi %12, %14 : vector<1x1x1x128xi1>
    %16 = arith.extui %15 : vector<1x1x1x128xi1> to vector<1x1x1x128xi32>
    %17 = arith.sitofp %16 : vector<1x1x1x128xi32> to vector<1x1x1x128xf32>
    %c1_i32_9 = arith.constant 1 : i32
    %18 = tpu.dynamic_rotate %0 by %c1_i32_9 dim 2 : vector<1x4x16x128xf32>, i32 -> vector<1x4x16x128xf32>
    %c1_i32_10 = arith.constant 1 : i32
    %19 = tpu.dynamic_rotate %1 by %c1_i32_10 dim 2 : vector<1x4x16x128xf32>, i32 -> vector<1x4x16x128xf32>
    %20 = arith.subf %18, %0 : vector<1x4x16x128xf32>
    %21 = arith.subf %19, %1 : vector<1x4x16x128xf32>
    %22 = arith.mulf %20, %20 : vector<1x4x16x128xf32>
    %cst = arith.constant 8.100000e-01 : f32
    %23 = vector.broadcast %cst : f32 to vector<1x4x16x128xf32>
    %24 = arith.addf %23, %22 : vector<1x4x16x128xf32>
    %25 = math.rsqrt %24 : vector<1x4x16x128xf32>
    %26 = arith.mulf %20, %25 : vector<1x4x16x128xf32>
    %27 = arith.mulf %21, %21 : vector<1x4x16x128xf32>
    %cst_11 = arith.constant 8.100000e-01 : f32
    %28 = vector.broadcast %cst_11 : f32 to vector<1x4x16x128xf32>
    %29 = arith.addf %28, %27 : vector<1x4x16x128xf32>
    %30 = math.rsqrt %29 : vector<1x4x16x128xf32>
    %31 = arith.mulf %21, %30 : vector<1x4x16x128xf32>
    %32 = arith.subf %26, %31 : vector<1x4x16x128xf32>
    %33 = arith.mulf %32, %32 : vector<1x4x16x128xf32>
    %cst_12 = arith.constant 1.000000e-01 : f32
    %34 = vector.broadcast %cst_12 : f32 to vector<1x4x16x128xf32>
    %35 = arith.addf %33, %34 : vector<1x4x16x128xf32>
    %36 = tpu.reciprocal %35 {approx = true} : vector<1x4x16x128xf32> -> vector<1x4x16x128xf32>
    %37 = arith.mulf %35, %36 : vector<1x4x16x128xf32>
    %cst_13 = arith.constant 2.000000e+00 : f32
    %38 = vector.broadcast %cst_13 : f32 to vector<1x4x16x128xf32>
    %39 = arith.subf %38, %37 : vector<1x4x16x128xf32>
    %40 = arith.mulf %36, %39 : vector<1x4x16x128xf32>
    %41 = arith.mulf %33, %40 : vector<1x4x16x128xf32>
    %c2_i32 = arith.constant 2 : i32
    %42 = vector.broadcast %c2_i32 : i32 to vector<1x1x16x1xi32>
    %43 = arith.cmpi sge, %2, %42 : vector<1x1x16x1xi32>
    %c16_i32 = arith.constant 16 : i32
    %44 = vector.broadcast %c16_i32 : i32 to vector<1x1x16x1xi32>
    %45 = arith.cmpi slt, %2, %44 : vector<1x1x16x1xi32>
    %46 = arith.andi %43, %45 : vector<1x1x16x1xi1>
    %47 = arith.extui %46 : vector<1x1x16x1xi1> to vector<1x1x16x1xi32>
    %48 = arith.sitofp %47 : vector<1x1x16x1xi32> to vector<1x1x16x1xf32>
    %c1_i32_14 = arith.constant 1 : i32
    %49 = vector.broadcast %c1_i32_14 : i32 to vector<1x1x1x128xi32>
    %50 = arith.cmpi sge, %3, %49 : vector<1x1x1x128xi32>
    %c15_i32_15 = arith.constant 15 : i32
    %51 = vector.broadcast %c15_i32_15 : i32 to vector<1x1x1x128xi32>
    %52 = arith.cmpi slt, %3, %51 : vector<1x1x1x128xi32>
    %53 = arith.andi %50, %52 : vector<1x1x1x128xi1>
    %54 = arith.extui %53 : vector<1x1x1x128xi1> to vector<1x1x1x128xi32>
    %55 = arith.sitofp %54 : vector<1x1x1x128xi32> to vector<1x1x1x128xf32>
    %56 = vector.broadcast %10 : vector<1x1x16x1xf32> to vector<1x1x16x128xf32>
    %57 = vector.broadcast %17 : vector<1x1x1x128xf32> to vector<1x1x16x128xf32>
    %58 = arith.mulf %56, %57 : vector<1x1x16x128xf32>
    %59 = vector.broadcast %48 : vector<1x1x16x1xf32> to vector<1x1x16x128xf32>
    %60 = vector.broadcast %55 : vector<1x1x1x128xf32> to vector<1x1x16x128xf32>
    %61 = arith.mulf %59, %60 : vector<1x1x16x128xf32>
    %62 = arith.addf %58, %61 : vector<1x1x16x128xf32>
    %63 = vector.broadcast %62 : vector<1x1x16x128xf32> to vector<1x4x16x128xf32>
    %64 = arith.mulf %41, %63 : vector<1x4x16x128xf32>
    %65 = vector.shape_cast %64 : vector<1x4x16x128xf32> to vector<1x1x4x16x128xf32>
    %cst_16 = arith.constant dense<0.000000e+00> : vector<1xf32>
    %66 = vector.multi_reduction <add>, %65, %cst_16 [1, 2, 3, 4] : vector<1x1x4x16x128xf32> to vector<1xf32>
    %67 = vector.shape_cast %66 : vector<1xf32> to vector<1x1x1x1x1xf32>
    %68 = vector.extract %67[0, 0, 0, 0, 0] : f32 from vector<1x1x1x1x1xf32>
    %c1_i32_17 = arith.constant 1 : i32
    %69 = tpu.dynamic_rotate %18 by %c1_i32_17 dim 3 : vector<1x4x16x128xf32>, i32 -> vector<1x4x16x128xf32>
    %c1_i32_18 = arith.constant 1 : i32
    %70 = tpu.dynamic_rotate %19 by %c1_i32_18 dim 3 : vector<1x4x16x128xf32>, i32 -> vector<1x4x16x128xf32>
    %71 = arith.subf %69, %0 : vector<1x4x16x128xf32>
    %72 = arith.subf %70, %1 : vector<1x4x16x128xf32>
    %73 = arith.mulf %71, %71 : vector<1x4x16x128xf32>
    %cst_19 = arith.constant 8.100000e-01 : f32
    %74 = vector.broadcast %cst_19 : f32 to vector<1x4x16x128xf32>
    %75 = arith.addf %74, %73 : vector<1x4x16x128xf32>
    %76 = math.rsqrt %75 : vector<1x4x16x128xf32>
    %77 = arith.mulf %71, %76 : vector<1x4x16x128xf32>
    %78 = arith.mulf %72, %72 : vector<1x4x16x128xf32>
    %cst_20 = arith.constant 8.100000e-01 : f32
    %79 = vector.broadcast %cst_20 : f32 to vector<1x4x16x128xf32>
    %80 = arith.addf %79, %78 : vector<1x4x16x128xf32>
    %81 = math.rsqrt %80 : vector<1x4x16x128xf32>
    %82 = arith.mulf %72, %81 : vector<1x4x16x128xf32>
    %83 = arith.subf %77, %82 : vector<1x4x16x128xf32>
    %84 = arith.mulf %83, %83 : vector<1x4x16x128xf32>
    %cst_21 = arith.constant 1.000000e-01 : f32
    %85 = vector.broadcast %cst_21 : f32 to vector<1x4x16x128xf32>
    %86 = arith.addf %84, %85 : vector<1x4x16x128xf32>
    %87 = tpu.reciprocal %86 {approx = true} : vector<1x4x16x128xf32> -> vector<1x4x16x128xf32>
    %88 = arith.mulf %86, %87 : vector<1x4x16x128xf32>
    %cst_22 = arith.constant 2.000000e+00 : f32
    %89 = vector.broadcast %cst_22 : f32 to vector<1x4x16x128xf32>
    %90 = arith.subf %89, %88 : vector<1x4x16x128xf32>
    %91 = arith.mulf %87, %90 : vector<1x4x16x128xf32>
    %92 = arith.mulf %84, %91 : vector<1x4x16x128xf32>
    %c2_i32_23 = arith.constant 2 : i32
    %93 = vector.broadcast %c2_i32_23 : i32 to vector<1x1x16x1xi32>
    %94 = arith.cmpi sge, %2, %93 : vector<1x1x16x1xi32>
    %c16_i32_24 = arith.constant 16 : i32
    %95 = vector.broadcast %c16_i32_24 : i32 to vector<1x1x16x1xi32>
    %96 = arith.cmpi slt, %2, %95 : vector<1x1x16x1xi32>
    %97 = arith.andi %94, %96 : vector<1x1x16x1xi1>
    %98 = arith.extui %97 : vector<1x1x16x1xi1> to vector<1x1x16x1xi32>
    %99 = arith.sitofp %98 : vector<1x1x16x1xi32> to vector<1x1x16x1xf32>
    %c2_i32_25 = arith.constant 2 : i32
    %100 = vector.broadcast %c2_i32_25 : i32 to vector<1x1x1x128xi32>
    %101 = arith.cmpi sge, %3, %100 : vector<1x1x1x128xi32>
    %c16_i32_26 = arith.constant 16 : i32
    %102 = vector.broadcast %c16_i32_26 : i32 to vector<1x1x1x128xi32>
    %103 = arith.cmpi slt, %3, %102 : vector<1x1x1x128xi32>
    %104 = arith.andi %101, %103 : vector<1x1x1x128xi1>
    %105 = arith.extui %104 : vector<1x1x1x128xi1> to vector<1x1x1x128xi32>
    %106 = arith.sitofp %105 : vector<1x1x1x128xi32> to vector<1x1x1x128xf32>
    %107 = vector.broadcast %10 : vector<1x1x16x1xf32> to vector<1x1x16x128xf32>
    %108 = vector.broadcast %17 : vector<1x1x1x128xf32> to vector<1x1x16x128xf32>
    %109 = arith.mulf %107, %108 : vector<1x1x16x128xf32>
    %110 = vector.broadcast %99 : vector<1x1x16x1xf32> to vector<1x1x16x128xf32>
    %111 = vector.broadcast %106 : vector<1x1x1x128xf32> to vector<1x1x16x128xf32>
    %112 = arith.mulf %110, %111 : vector<1x1x16x128xf32>
    %113 = arith.addf %109, %112 : vector<1x1x16x128xf32>
    %114 = vector.broadcast %113 : vector<1x1x16x128xf32> to vector<1x4x16x128xf32>
    %115 = arith.mulf %92, %114 : vector<1x4x16x128xf32>
    %116 = vector.shape_cast %115 : vector<1x4x16x128xf32> to vector<1x1x4x16x128xf32>
    %cst_27 = arith.constant dense<0.000000e+00> : vector<1xf32>
    %117 = vector.multi_reduction <add>, %116, %cst_27 [1, 2, 3, 4] : vector<1x1x4x16x128xf32> to vector<1xf32>
    %118 = vector.shape_cast %117 : vector<1xf32> to vector<1x1x1x1x1xf32>
    %119 = vector.extract %118[0, 0, 0, 0, 0] : f32 from vector<1x1x1x1x1xf32>
    %120 = arith.addf %68, %119 : f32
    %c127_i32 = arith.constant 127 : i32
    %121 = tpu.dynamic_rotate %18 by %c127_i32 dim 3 : vector<1x4x16x128xf32>, i32 -> vector<1x4x16x128xf32>
    %c127_i32_28 = arith.constant 127 : i32
    %122 = tpu.dynamic_rotate %19 by %c127_i32_28 dim 3 : vector<1x4x16x128xf32>, i32 -> vector<1x4x16x128xf32>
    %123 = arith.subf %121, %0 : vector<1x4x16x128xf32>
    %124 = arith.subf %122, %1 : vector<1x4x16x128xf32>
    %125 = arith.mulf %123, %123 : vector<1x4x16x128xf32>
    %cst_29 = arith.constant 8.100000e-01 : f32
    %126 = vector.broadcast %cst_29 : f32 to vector<1x4x16x128xf32>
    %127 = arith.addf %126, %125 : vector<1x4x16x128xf32>
    %128 = math.rsqrt %127 : vector<1x4x16x128xf32>
    %129 = arith.mulf %123, %128 : vector<1x4x16x128xf32>
    %130 = arith.mulf %124, %124 : vector<1x4x16x128xf32>
    %cst_30 = arith.constant 8.100000e-01 : f32
    %131 = vector.broadcast %cst_30 : f32 to vector<1x4x16x128xf32>
    %132 = arith.addf %131, %130 : vector<1x4x16x128xf32>
    %133 = math.rsqrt %132 : vector<1x4x16x128xf32>
    %134 = arith.mulf %124, %133 : vector<1x4x16x128xf32>
    %135 = arith.subf %129, %134 : vector<1x4x16x128xf32>
    %136 = arith.mulf %135, %135 : vector<1x4x16x128xf32>
    %cst_31 = arith.constant 1.000000e-01 : f32
    %137 = vector.broadcast %cst_31 : f32 to vector<1x4x16x128xf32>
    %138 = arith.addf %136, %137 : vector<1x4x16x128xf32>
    %139 = tpu.reciprocal %138 {approx = true} : vector<1x4x16x128xf32> -> vector<1x4x16x128xf32>
    %140 = arith.mulf %138, %139 : vector<1x4x16x128xf32>
    %cst_32 = arith.constant 2.000000e+00 : f32
    %141 = vector.broadcast %cst_32 : f32 to vector<1x4x16x128xf32>
    %142 = arith.subf %141, %140 : vector<1x4x16x128xf32>
    %143 = arith.mulf %139, %142 : vector<1x4x16x128xf32>
    %144 = arith.mulf %136, %143 : vector<1x4x16x128xf32>
    %c2_i32_33 = arith.constant 2 : i32
    %145 = vector.broadcast %c2_i32_33 : i32 to vector<1x1x16x1xi32>
    %146 = arith.cmpi sge, %2, %145 : vector<1x1x16x1xi32>
    %c16_i32_34 = arith.constant 16 : i32
    %147 = vector.broadcast %c16_i32_34 : i32 to vector<1x1x16x1xi32>
    %148 = arith.cmpi slt, %2, %147 : vector<1x1x16x1xi32>
    %149 = arith.andi %146, %148 : vector<1x1x16x1xi1>
    %150 = arith.extui %149 : vector<1x1x16x1xi1> to vector<1x1x16x1xi32>
    %151 = arith.sitofp %150 : vector<1x1x16x1xi32> to vector<1x1x16x1xf32>
    %c0_i32 = arith.constant 0 : i32
    %152 = vector.broadcast %c0_i32 : i32 to vector<1x1x1x128xi32>
    %153 = arith.cmpi sge, %3, %152 : vector<1x1x1x128xi32>
    %c14_i32 = arith.constant 14 : i32
    %154 = vector.broadcast %c14_i32 : i32 to vector<1x1x1x128xi32>
    %155 = arith.cmpi slt, %3, %154 : vector<1x1x1x128xi32>
    %156 = arith.andi %153, %155 : vector<1x1x1x128xi1>
    %157 = arith.extui %156 : vector<1x1x1x128xi1> to vector<1x1x1x128xi32>
    %158 = arith.sitofp %157 : vector<1x1x1x128xi32> to vector<1x1x1x128xf32>
    %159 = vector.broadcast %10 : vector<1x1x16x1xf32> to vector<1x1x16x128xf32>
    %160 = vector.broadcast %17 : vector<1x1x1x128xf32> to vector<1x1x16x128xf32>
    %161 = arith.mulf %159, %160 : vector<1x1x16x128xf32>
    %162 = vector.broadcast %151 : vector<1x1x16x1xf32> to vector<1x1x16x128xf32>
    %163 = vector.broadcast %158 : vector<1x1x1x128xf32> to vector<1x1x16x128xf32>
    %164 = arith.mulf %162, %163 : vector<1x1x16x128xf32>
    %165 = arith.addf %161, %164 : vector<1x1x16x128xf32>
    %166 = vector.broadcast %165 : vector<1x1x16x128xf32> to vector<1x4x16x128xf32>
    %167 = arith.mulf %144, %166 : vector<1x4x16x128xf32>
    %168 = vector.shape_cast %167 : vector<1x4x16x128xf32> to vector<1x1x4x16x128xf32>
    %cst_35 = arith.constant dense<0.000000e+00> : vector<1xf32>
    %169 = vector.multi_reduction <add>, %168, %cst_35 [1, 2, 3, 4] : vector<1x1x4x16x128xf32> to vector<1xf32>
    %170 = vector.shape_cast %169 : vector<1xf32> to vector<1x1x1x1x1xf32>
    %171 = vector.extract %170[0, 0, 0, 0, 0] : f32 from vector<1x1x1x1x1xf32>
    %172 = arith.addf %120, %171 : f32
    %c1_i32_36 = arith.constant 1 : i32
    %173 = tpu.dynamic_rotate %0 by %c1_i32_36 dim 3 : vector<1x4x16x128xf32>, i32 -> vector<1x4x16x128xf32>
    %c1_i32_37 = arith.constant 1 : i32
    %174 = tpu.dynamic_rotate %1 by %c1_i32_37 dim 3 : vector<1x4x16x128xf32>, i32 -> vector<1x4x16x128xf32>
    %175 = arith.subf %173, %0 : vector<1x4x16x128xf32>
    %176 = arith.subf %174, %1 : vector<1x4x16x128xf32>
    %177 = arith.mulf %175, %175 : vector<1x4x16x128xf32>
    %cst_38 = arith.constant 8.100000e-01 : f32
    %178 = vector.broadcast %cst_38 : f32 to vector<1x4x16x128xf32>
    %179 = arith.addf %178, %177 : vector<1x4x16x128xf32>
    %180 = math.rsqrt %179 : vector<1x4x16x128xf32>
    %181 = arith.mulf %175, %180 : vector<1x4x16x128xf32>
    %182 = arith.mulf %176, %176 : vector<1x4x16x128xf32>
    %cst_39 = arith.constant 8.100000e-01 : f32
    %183 = vector.broadcast %cst_39 : f32 to vector<1x4x16x128xf32>
    %184 = arith.addf %183, %182 : vector<1x4x16x128xf32>
    %185 = math.rsqrt %184 : vector<1x4x16x128xf32>
    %186 = arith.mulf %176, %185 : vector<1x4x16x128xf32>
    %187 = arith.subf %181, %186 : vector<1x4x16x128xf32>
    %188 = arith.mulf %187, %187 : vector<1x4x16x128xf32>
    %cst_40 = arith.constant 1.000000e-01 : f32
    %189 = vector.broadcast %cst_40 : f32 to vector<1x4x16x128xf32>
    %190 = arith.addf %188, %189 : vector<1x4x16x128xf32>
    %191 = tpu.reciprocal %190 {approx = true} : vector<1x4x16x128xf32> -> vector<1x4x16x128xf32>
    %192 = arith.mulf %190, %191 : vector<1x4x16x128xf32>
    %cst_41 = arith.constant 2.000000e+00 : f32
    %193 = vector.broadcast %cst_41 : f32 to vector<1x4x16x128xf32>
    %194 = arith.subf %193, %192 : vector<1x4x16x128xf32>
    %195 = arith.mulf %191, %194 : vector<1x4x16x128xf32>
    %196 = arith.mulf %188, %195 : vector<1x4x16x128xf32>
    %c1_i32_42 = arith.constant 1 : i32
    %197 = vector.broadcast %c1_i32_42 : i32 to vector<1x1x16x1xi32>
    %198 = arith.cmpi sge, %2, %197 : vector<1x1x16x1xi32>
    %c15_i32_43 = arith.constant 15 : i32
    %199 = vector.broadcast %c15_i32_43 : i32 to vector<1x1x16x1xi32>
    %200 = arith.cmpi slt, %2, %199 : vector<1x1x16x1xi32>
    %201 = arith.andi %198, %200 : vector<1x1x16x1xi1>
    %202 = arith.extui %201 : vector<1x1x16x1xi1> to vector<1x1x16x1xi32>
    %203 = arith.sitofp %202 : vector<1x1x16x1xi32> to vector<1x1x16x1xf32>
    %c2_i32_44 = arith.constant 2 : i32
    %204 = vector.broadcast %c2_i32_44 : i32 to vector<1x1x1x128xi32>
    %205 = arith.cmpi sge, %3, %204 : vector<1x1x1x128xi32>
    %c16_i32_45 = arith.constant 16 : i32
    %206 = vector.broadcast %c16_i32_45 : i32 to vector<1x1x1x128xi32>
    %207 = arith.cmpi slt, %3, %206 : vector<1x1x1x128xi32>
    %208 = arith.andi %205, %207 : vector<1x1x1x128xi1>
    %209 = arith.extui %208 : vector<1x1x1x128xi1> to vector<1x1x1x128xi32>
    %210 = arith.sitofp %209 : vector<1x1x1x128xi32> to vector<1x1x1x128xf32>
    %211 = vector.broadcast %10 : vector<1x1x16x1xf32> to vector<1x1x16x128xf32>
    %212 = vector.broadcast %17 : vector<1x1x1x128xf32> to vector<1x1x16x128xf32>
    %213 = arith.mulf %211, %212 : vector<1x1x16x128xf32>
    %214 = vector.broadcast %203 : vector<1x1x16x1xf32> to vector<1x1x16x128xf32>
    %215 = vector.broadcast %210 : vector<1x1x1x128xf32> to vector<1x1x16x128xf32>
    %216 = arith.mulf %214, %215 : vector<1x1x16x128xf32>
    %217 = arith.addf %213, %216 : vector<1x1x16x128xf32>
    %218 = vector.broadcast %217 : vector<1x1x16x128xf32> to vector<1x4x16x128xf32>
    %219 = arith.mulf %196, %218 : vector<1x4x16x128xf32>
    %220 = vector.shape_cast %219 : vector<1x4x16x128xf32> to vector<1x1x4x16x128xf32>
    %cst_46 = arith.constant dense<0.000000e+00> : vector<1xf32>
    %221 = vector.multi_reduction <add>, %220, %cst_46 [1, 2, 3, 4] : vector<1x1x4x16x128xf32> to vector<1xf32>
    %222 = vector.shape_cast %221 : vector<1xf32> to vector<1x1x1x1x1xf32>
    %223 = vector.extract %222[0, 0, 0, 0, 0] : f32 from vector<1x1x1x1x1xf32>
    %224 = arith.addf %172, %223 : f32
    %225 = vector.broadcast %224 : f32 to vector<1x1x1x128xf32>
    %c0_47 = arith.constant 0 : index
    %c0_48 = arith.constant 0 : index
    %c0_49 = arith.constant 0 : index
    %c0_50 = arith.constant 0 : index
    %226 = vector.load %arg4[%c0_47, %c0_48, %c0_49, %c0_50] : memref<1x1x1x128xf32, #tpu.memory_space<vmem>>, vector<1x1x1x128xf32>
    tpu.vector_store %arg4[%c0_47, %c0_48, %c0_49, %c0_50], %225 {strides = array<i32>} : memref<1x1x1x128xf32, #tpu.memory_space<vmem>>, vector<1x1x1x128xf32>,
    return
  }
  func.func @transform_0(%arg0: i32, %arg1: i32) -> (i32, i32, i32, i32) {
    %c0_i32 = arith.constant 0 : i32
    %c0_i32_0 = arith.constant 0 : i32
    %c0_i32_1 = arith.constant 0 : i32
    return %arg0, %arg1, %c0_i32, %c0_i32_0 : i32, i32, i32, i32
  }
  func.func @transform_1(%arg0: i32, %arg1: i32) -> (i32, i32, i32, i32) {
    %c0_i32 = arith.constant 0 : i32
    %c0_i32_0 = arith.constant 0 : i32
    %c0_i32_1 = arith.constant 0 : i32
    return %arg0, %arg1, %c0_i32, %c0_i32_0 : i32, i32, i32, i32
  }
  func.func @transform_2(%arg0: i32, %arg1: i32) -> (i32, i32, i32, i32) {
    %c0_i32 = arith.constant 0 : i32
    %c0_i32_0 = arith.constant 0 : i32
    %c0_i32_1 = arith.constant 0 : i32
    return %arg0, %arg1, %c0_i32, %c0_i32_0 : i32, i32, i32, i32
  }
}

</mosaic_0001>

<llo_original>
// kernel: geometry_loss.1
$region0: #{geometry_loss.1}
  #allocation0 [shape = 'u32[]', space=smem, size = 0x4, offset = 0x4, fixed_abs, tag = 'smem constant byte address 0x4 - core index']
  #allocation1 [shape = 'u32[144,128]{1,0:T(1,128)}', space=vmem, size = 0x12000, scoped, tag = 'internal scratch']
  %s0 = inlined_call_operand.vmem [shape: f32[2,4,16,128], index: 0, kind: input, shape index: {}]
  %s1 = inlined_call_operand.vmem [shape: f32[2,4,16,128], index: 1, kind: input, shape index: {}]
  %s2 = inlined_call_operand.vmem [shape: f32[2,1,1,128], index: 2, kind: output, shape index: {}]
  %s3 = sld [smem:[#allocation0]]
  $region41: #{geometry_loss.1} parent=0
    _
  %s5 = ssub.s32 1, %s3
  %s6 = scalar_select 0, %s5, %s3
  loop: start=0, step=1, limit=4
  $region2: #{geometry_loss.1} parent=0 // loop_pre_header
    _
  $region3: #{geometry_loss.1} parent=0 // loop_header
    %s8 = sphi 0, %s12
    %p9 = scmp.ge.s32.totalorder %s8, 4
    %s15 = sphi 0, %s27
    %s16 = sphi 0, %s23
    %s17 = sphi 0, %s15
    %s18 = sphi 0, %s16
    %s19 = sphi 0, %s17
    %s20 = sphi 0, %s18
    %s32 = sphi 0, %s34
    %s35 = sphi 0, %s32
    %s36 = sphi 0, %s35
    %s52 = sphi 0, %s36
    %s60 = sphi 0, %s62
    %s63 = sphi 0, %s60
    %s64 = sphi 0, %s63
    %s80 = sphi 0, %s64
    %s88 = sphi 0, %s90
    %s91 = sphi 0, %s88
    %s92 = sphi 0, %s91
    %s108 = sphi 0, %s92
  $region4: #{geometry_loss.1} parent=0 // loop_header_branch
    %11 = sbr.rel (%p9) target = $region8
  $region5: #{geometry_loss.1} parent=0 // loop_body
    %s13 = ssub.s32 %s8, 1
    %s14 = ssub.s32 %s8, 2
    %s21 = sadd.s32 1, %s16
    %p22 = scmp.ge.s32.totalorder %s21, 1
    %s23 = scalar_select %p22, 0, %s21
    %s24 = sadd.s32 1, %s15
    %s25 = scalar_select %p22, %s24, %s15
    %p26 = scmp.ge.s32.totalorder %s25, 2
    %s27 = scalar_select %p26, 0, %s25
    %s28 = ssub.s32 %s15, %s27
    %s29 = ssub.s32 %s16, %s23
    %s30 = sor.u32 %s28, %s29
    %p31 = scmp.eq.s32.totalorder %s30, 0
    %s33 = sadd.s32 %s32, 1
    %s34 = scalar_select %p31, %s32, %s33
    %p37 = pneg %p31
    %p38 = scmp.eq.s32.totalorder %s8, 1
    %p39 = por %p37, %p38
    %p40 = scmp.ne.s32.totalorder %s32, %s35
    %p41 = scmp.eq.s32.totalorder %s8, 0
    %p42 = por %p40, %p41
    %p43 = scmp.ne.s32.totalorder %s32, %s35
    %p44 = scmp.eq.s32.totalorder %s13, 1
    %p45 = por %p43, %p44
    %p46 = scmp.ne.s32.totalorder %s35, %s36
    %p47 = scmp.eq.s32.totalorder %s13, 0
    %p48 = por %p46, %p47
    %p49 = scmp.ne.s32.totalorder %s35, %s36
    %p50 = scmp.eq.s32.totalorder %s14, 1
    %p51 = por %p49, %p50
    %p53 = scmp.ne.s32.totalorder %s36, %s52
    %p54 = scmp.eq.s32.totalorder %s14, 0
    %p55 = por %p53, %p54
    %s56 = ssub.s32 %s15, %s27
    %s57 = ssub.s32 %s16, %s23
    %s58 = sor.u32 %s56, %s57
    %p59 = scmp.eq.s32.totalorder %s58, 0
    %s61 = sadd.s32 %s60, 1
    %s62 = scalar_select %p59, %s60, %s61
    %p65 = pneg %p59
    %p66 = scmp.eq.s32.totalorder %s8, 1
    %p67 = por %p65, %p66
    %p68 = scmp.ne.s32.totalorder %s60, %s63
    %p69 = scmp.eq.s32.totalorder %s8, 0
    %p70 = por %p68, %p69
    %p71 = scmp.ne.s32.totalorder %s60, %s63
    %p72 = scmp.eq.s32.totalorder %s13, 1
    %p73 = por %p71, %p72
    %p74 = scmp.ne.s32.totalorder %s63, %s64
    %p75 = scmp.eq.s32.totalorder %s13, 0
    %p76 = por %p74, %p75
    %p77 = scmp.ne.s32.totalorder %s63, %s64
    %p78 = scmp.eq.s32.totalorder %s14, 1
    %p79 = por %p77, %p78
    %p81 = scmp.ne.s32.totalorder %s64, %s80
    %p82 = scmp.eq.s32.totalorder %s14, 0
    %p83 = por %p81, %p82
    %s84 = ssub.s32 %s15, %s27
    %s85 = ssub.s32 %s16, %s23
    %s86 = sor.u32 %s84, %s85
    %p87 = scmp.eq.s32.totalorder %s86, 0
    %s89 = sadd.s32 %s88, 1
    %s90 = scalar_select %p87, %s88, %s89
    %p93 = pneg %p87
    %p94 = scmp.eq.s32.totalorder %s8, 1
    %p95 = por %p93, %p94
    %p96 = scmp.ne.s32.totalorder %s88, %s91
    %p97 = scmp.eq.s32.totalorder %s8, 0
    %p98 = por %p96, %p97
    %p99 = scmp.ne.s32.totalorder %s88, %s91
    %p100 = scmp.eq.s32.totalorder %s13, 1
    %p101 = por %p99, %p100
    %p102 = scmp.ne.s32.totalorder %s91, %s92
    %p103 = scmp.eq.s32.totalorder %s13, 0
    %p104 = por %p102, %p103
    %p105 = scmp.ne.s32.totalorder %s91, %s92
    %p106 = scmp.eq.s32.totalorder %s14, 1
    %p107 = por %p105, %p106
    %p109 = scmp.ne.s32.totalorder %s92, %s108
    %p110 = scmp.eq.s32.totalorder %s14, 0
    %p111 = por %p109, %p110
    %p112 = scmp.le.s32.totalorder 1, %s8
    %p113 = scmp.lt.s32.totalorder %s8, 3
    %p114 = pnand %p112, %p113
    %p115 = pneg %p114
    // Predicated region
    $region9: #{geometry_loss.1} parent=5 // pred_check
      _
    $region10: #{geometry_loss.1} parent=5 // pred_check_branch
      %117 = sbr.rel (%p114) target = $region12
    $region11: #{geometry_loss.1} parent=5 // pred_region
      %s118 = ssub.s32 %s8, 1
    $region12: #{geometry_loss.1} parent=5 // pred_fallthru
      _
    %p119 = scmp.lt.s32.totalorder %s8, 2
    // Predicated region
    $region13: #{geometry_loss.1} parent=5 // pred_check
      %p120 = pneg %p119
    $region14: #{geometry_loss.1} parent=5 // pred_check_branch
      %122 = sbr.rel (%p120) target = $region16
    $region15: #{geometry_loss.1} parent=5 // pred_region
      // Predicated region
      $region17: #{geometry_loss.1} parent=15 // pred_check
        %p123 = pneg %p42
      $region18: #{geometry_loss.1} parent=15 // pred_check_branch
        %125 = sbr.rel (%p123) target = $region20
      $region19: #{geometry_loss.1} parent=15 // pred_region
        %s126 = smul.u32 4, %s16
        %p127 = scmp.lt.s32.totalorder %s15, 1
        %s128 = scalar_select %p127, %s15, 1
        %p129 = scmp.lt.s32.totalorder %s126, 3
        %s130 = scalar_select %p129, %s126, 3
        %s131 = smul.addr %s130, 2
        %s132 = smul.addr %s128, 8
        %s133 = sadd.s32 %s131, %s132
        %s134 = smul.addr %s133, 8
        %s135 = scalar_lea.vmem %s0, %s134
        %s136 = smul.u32 4, %s16
      $region20: #{geometry_loss.1} parent=15 // pred_fallthru
        _
      // Predicated region
      $region21: #{geometry_loss.1} parent=15 // pred_check
        %p137 = pneg %p70
      $region22: #{geometry_loss.1} parent=15 // pred_check_branch
        %139 = sbr.rel (%p137) target = $region24
      $region23: #{geometry_loss.1} parent=15 // pred_region
        %s140 = smul.u32 4, %s16
        %p141 = scmp.lt.s32.totalorder %s15, 1
        %s142 = scalar_select %p141, %s15, 1
        %p143 = scmp.lt.s32.totalorder %s140, 3
        %s144 = scalar_select %p143, %s140, 3
        %s145 = smul.addr %s144, 2
        %s146 = smul.addr %s142, 8
        %s147 = sadd.s32 %s145, %s146
        %s148 = smul.addr %s147, 8
        %s149 = scalar_lea.vmem %s1, %s148
        %s150 = smul.u32 4, %s16
      $region24: #{geometry_loss.1} parent=15 // pred_fallthru
        _
    $region16: #{geometry_loss.1} parent=5 // pred_fallthru
      _
    %p151 = scmp.le.s32.totalorder 1, %s8
    %p152 = scmp.lt.s32.totalorder %s8, 3
    %p153 = pnand %p151, %p152
    %p154 = pneg %p153
    // Predicated region
    $region25: #{geometry_loss.1} parent=5 // pred_check
      _
    $region26: #{geometry_loss.1} parent=5 // pred_check_branch
      %156 = sbr.rel (%p153) target = $region28
    $region27: #{geometry_loss.1} parent=5 // pred_region
      %s157 = ssub.s32 %s8, 1
      %s158 = smul.u32 4, %s18
      %p159 = scmp.lt.s32.totalorder %s17, 1
      %s160 = scalar_select %p159, %s17, 1
      %p161 = scmp.lt.s32.totalorder %s158, 3
      %s162 = scalar_select %p161, %s158, 3
      %s163 = smul.addr %s162, 2
      %s164 = smul.addr %s160, 8
      %s165 = sadd.s32 %s163, %s164
      %s166 = smul.addr %s165, 8
      %s167 = scalar_lea.vmem %s0, %s166
      %p168 = pneg %p48
      %p169 = pneg %p45
      %s170 = smul.u32 4, %s18
      %p171 = scmp.lt.s32.totalorder %s17, 1
      %s172 = scalar_select %p171, %s17, 1
      %p173 = scmp.lt.s32.totalorder %s170, 3
      %s174 = scalar_select %p173, %s170, 3
      %s175 = smul.addr %s174, 2
      %s176 = smul.addr %s172, 8
      %s177 = sadd.s32 %s175, %s176
      %s178 = smul.addr %s177, 8
      %s179 = scalar_lea.vmem %s1, %s178
      %p180 = pneg %p76
      %p181 = pneg %p73
      %p182 = pneg %p104
      %p183 = pneg %p101
      %p184 = scmp.lt.s32.totalorder %s17, 1
      %s185 = scalar_select %p184, %s17, 1
      %p186 = scmp.lt.s32.totalorder %s18, 0
      %s187 = scalar_select %p186, %s18, 0
      %s188 = sadd.s32 %s187, %s185
      %s189 = scalar_lea.vmem %s2, %s188
      %s190 = smul.u32 4, %s18
      %p191 = scmp.lt.s32.totalorder %s17, 1
      %s192 = scalar_select %p191, %s17, 1
      %p193 = scmp.lt.s32.totalorder %s190, 3
      %s194 = scalar_select %p193, %s190, 3
      %s195 = smul.addr %s194, 2
      %s196 = smul.addr %s192, 8
      %s197 = sadd.s32 %s195, %s196
      %s198 = smul.addr %s197, 8
      %s199 = scalar_lea.vmem %s0, %s198
      %s200 = smul.u32 4, %s18
      %s201 = smul.u32 4, %s18
      %p202 = scmp.lt.s32.totalorder %s17, 1
      %s203 = scalar_select %p202, %s17, 1
      %p204 = scmp.lt.s32.totalorder %s201, 3
      %s205 = scalar_select %p204, %s201, 3
      %s206 = smul.addr %s205, 2
      %s207 = smul.addr %s203, 8
      %s208 = sadd.s32 %s206, %s207
      %s209 = smul.addr %s208, 8
      %s210 = scalar_lea.vmem %s1, %s209
      %s211 = smul.u32 4, %s18
      %p212 = scmp.lt.s32.totalorder %s17, 1
      %s213 = scalar_select %p212, %s17, 1
      %p214 = scmp.lt.s32.totalorder %s18, 0
      %s215 = scalar_select %p214, %s18, 0
      %s216 = sadd.s32 %s215, %s213
      %s217 = scalar_lea.vmem %s2, %s216
      %v218 = vld [vmem:[%s199] sm:$0xff]
      %v219 = vld [vmem:[%s199 + $0x8] sm:$0xff]
      %v220 = vld [vmem:[%s199 + $0x10] sm:$0xff]
      %v221 = vld [vmem:[%s199 + $0x18] sm:$0xff]
      %v222 = vld [vmem:[%s199 + $0x20] sm:$0xff]
      %v223 = vld [vmem:[%s199 + $0x28] sm:$0xff]
      %v224 = vld [vmem:[%s199 + $0x30] sm:$0xff]
      %v225 = vld [vmem:[%s199 + $0x38] sm:$0xff]
      %v226 = vld [vmem:[%s210] sm:$0xff]
      %v227 = vld [vmem:[%s210 + $0x8] sm:$0xff]
      %v228 = vld [vmem:[%s210 + $0x10] sm:$0xff]
      %v229 = vld [vmem:[%s210 + $0x18] sm:$0xff]
      %v230 = vld [vmem:[%s210 + $0x20] sm:$0xff]
      %v231 = vld [vmem:[%s210 + $0x28] sm:$0xff]
      %v232 = vld [vmem:[%s210 + $0x30] sm:$0xff]
      %v233 = vld [vmem:[%s210 + $0x38] sm:$0xff]
      %v234 = vlaneseq
      %v235 = vshrl.u32 %v234, 7
      %v236 = vadd.s32 %v235, 8
      %v237 = vlaneseq
      %v238 = vand.u32 %v237, 127
      %vm239 = vcmp.ge.s32.totalorder %v235, 1
      %vm240 = vcmp.ge.s32.totalorder %v236, 1
      %vm241 = vcmp.lt.s32.totalorder %v235, 15
      %vm242 = vcmp.lt.s32.totalorder %v236, 15
      %vm243 = vmand %vm239, %vm241
      %vm244 = vmand %vm240, %vm242
      %v245 = vsel %vm243, 1, 0
      %v246 = vsel %vm244, 1, 0
      %v247 = vcvt.s32.f32 %v245
      %v248 = vcvt.s32.f32 %v246
      %vm249 = vcmp.ge.s32.totalorder %v238, 1
      %vm250 = vcmp.lt.s32.totalorder %v238, 15
      %vm251 = vmand %vm249, %vm250
      %v252 = vsel %vm251, 1, 0
      %v253 = vcvt.s32.f32 %v252
      %v254 = vrot.slane %v218, 7
      %v255 = vrot.slane %v220, 7
      %v256 = vrot.slane %v222, 7
      %v257 = vrot.slane %v224, 7
      %v258 = vrot.slane %v219, 7
      %v259 = vrot.slane %v221, 7
      %v260 = vrot.slane %v223, 7
      %v261 = vrot.slane %v225, 7
      %vm262 = vcmp.lt.s32.totalorder %v235, 1
      %v263 = vsel %vm262, %v254, %v258
      %v264 = vsel %vm262, %v255, %v259
      %v265 = vsel %vm262, %v256, %v260
      %v266 = vsel %vm262, %v257, %v261
      %v267 = vsel %vm262, %v258, %v254
      %v268 = vsel %vm262, %v259, %v255
      %v269 = vsel %vm262, %v260, %v256
      %v270 = vsel %vm262, %v261, %v257
      %v271 = vrot.slane %v226, 7
      %v272 = vrot.slane %v228, 7
      %v273 = vrot.slane %v230, 7
      %v274 = vrot.slane %v232, 7
      %v275 = vrot.slane %v227, 7
      %v276 = vrot.slane %v229, 7
      %v277 = vrot.slane %v231, 7
      %v278 = vrot.slane %v233, 7
      %v279 = vsel %vm262, %v271, %v275
      %v280 = vsel %vm262, %v272, %v276
      %v281 = vsel %vm262, %v273, %v277
      %v282 = vsel %vm262, %v274, %v278
      %v283 = vsel %vm262, %v275, %v271
      %v284 = vsel %vm262, %v276, %v272
      %v285 = vsel %vm262, %v277, %v273
      %v286 = vsel %vm262, %v278, %v274
      %v287 = vsub.f32 %v267, %v218
      %v288 = vsub.f32 %v263, %v219
      %v289 = vsub.f32 %v268, %v220
      %v290 = vsub.f32 %v264, %v221
      %v291 = vsub.f32 %v269, %v222
      %v292 = vsub.f32 %v265, %v223
      %v293 = vsub.f32 %v270, %v224
      %v294 = vsub.f32 %v266, %v225
      %v295 = vsub.f32 %v283, %v226
      %v296 = vsub.f32 %v279, %v227
      %v297 = vsub.f32 %v284, %v228
      %v298 = vsub.f32 %v280, %v229
      %v299 = vsub.f32 %v285, %v230
      %v300 = vsub.f32 %v281, %v231
      %v301 = vsub.f32 %v286, %v232
      %v302 = vsub.f32 %v282, %v233
      %v303 = vmul.f32 %v287, %v287
      %v304 = vmul.f32 %v288, %v288
      %v305 = vmul.f32 %v289, %v289
      %v306 = vmul.f32 %v290, %v290
      %v307 = vmul.f32 %v291, %v291
      %v308 = vmul.f32 %v292, %v292
      %v309 = vmul.f32 %v293, %v293
      %v310 = vmul.f32 %v294, %v294
      %v311 = vadd.f32 %v303, 0.81
      %v312 = vadd.f32 %v304, 0.81
      %v313 = vadd.f32 %v305, 0.81
      %v314 = vadd.f32 %v306, 0.81
      %v315 = vadd.f32 %v307, 0.81
      %v316 = vadd.f32 %v308, 0.81
      %v317 = vadd.f32 %v309, 0.81
      %v318 = vadd.f32 %v310, 0.81
      %v319 = vrsqrt.pop %v311
      %v320 = vrsqrt.pop %v312
      %v321 = vrsqrt.pop %v313
      %v322 = vrsqrt.pop %v314
      %v323 = vrsqrt.pop %v315
      %v324 = vrsqrt.pop %v316
      %v325 = vrsqrt.pop %v317
      %v326 = vrsqrt.pop %v318
      %v327 = vmul.f32 %v287, %v319
      %v328 = vmul.f32 %v288, %v320
      %v329 = vmul.f32 %v289, %v321
      %v330 = vmul.f32 %v290, %v322
      %v331 = vmul.f32 %v291, %v323
      %v332 = vmul.f32 %v292, %v324
      %v333 = vmul.f32 %v293, %v325
      %v334 = vmul.f32 %v294, %v326
      %v335 = vmul.f32 %v295, %v295
      %v336 = vmul.f32 %v296, %v296
      %v337 = vmul.f32 %v297, %v297
      %v338 = vmul.f32 %v298, %v298
      %v339 = vmul.f32 %v299, %v299
      %v340 = vmul.f32 %v300, %v300
      %v341 = vmul.f32 %v301, %v301
      %v342 = vmul.f32 %v302, %v302
      %v343 = vadd.f32 %v335, 0.81
      %v344 = vadd.f32 %v336, 0.81
      %v345 = vadd.f32 %v337, 0.81
      %v346 = vadd.f32 %v338, 0.81
      %v347 = vadd.f32 %v339, 0.81
      %v348 = vadd.f32 %v340, 0.81
      %v349 = vadd.f32 %v341, 0.81
      %v350 = vadd.f32 %v342, 0.81
      %v351 = vrsqrt.pop %v343
      %v352 = vrsqrt.pop %v344
      %v353 = vrsqrt.pop %v345
      %v354 = vrsqrt.pop %v346
      %v355 = vrsqrt.pop %v347
      %v356 = vrsqrt.pop %v348
      %v357 = vrsqrt.pop %v349
      %v358 = vrsqrt.pop %v350
      %v359 = vmul.f32 %v295, %v351
      %v360 = vmul.f32 %v296, %v352
      %v361 = vmul.f32 %v297, %v353
      %v362 = vmul.f32 %v298, %v354
      %v363 = vmul.f32 %v299, %v355
      %v364 = vmul.f32 %v300, %v356
      %v365 = vmul.f32 %v301, %v357
      %v366 = vmul.f32 %v302, %v358
      %v367 = vsub.f32 %v327, %v359
      %v368 = vsub.f32 %v328, %v360
      %v369 = vsub.f32 %v329, %v361
      %v370 = vsub.f32 %v330, %v362
      %v371 = vsub.f32 %v331, %v363
      %v372 = vsub.f32 %v332, %v364
      %v373 = vsub.f32 %v333, %v365
      %v374 = vsub.f32 %v334, %v366
      %v375 = vmul.f32 %v367, %v367
      %v376 = vmul.f32 %v368, %v368
      %v377 = vmul.f32 %v369, %v369
      %v378 = vmul.f32 %v370, %v370
      %v379 = vmul.f32 %v371, %v371
      %v380 = vmul.f32 %v372, %v372
      %v381 = vmul.f32 %v373, %v373
      %v382 = vmul.f32 %v374, %v374
      %v383 = vadd.f32 %v375, 0.1
      %v384 = vadd.f32 %v376, 0.1
      %v385 = vadd.f32 %v377, 0.1
      %v386 = vadd.f32 %v378, 0.1
      %v387 = vadd.f32 %v379, 0.1
      %v388 = vadd.f32 %v380, 0.1
      %v389 = vadd.f32 %v381, 0.1
      %v390 = vadd.f32 %v382, 0.1
      %v391 = vrcp.pop %v383
      %v392 = vrcp.pop %v384
      %v393 = vrcp.pop %v385
      %v394 = vrcp.pop %v386
      %v395 = vrcp.pop %v387
      %v396 = vrcp.pop %v388
      %v397 = vrcp.pop %v389
      %v398 = vrcp.pop %v390
      %v399 = vmul.f32 %v383, %v391
      %v400 = vmul.f32 %v384, %v392
      %v401 = vmul.f32 %v385, %v393
      %v402 = vmul.f32 %v386, %v394
      %v403 = vmul.f32 %v387, %v395
      %v404 = vmul.f32 %v388, %v396
      %v405 = vmul.f32 %v389, %v397
      %v406 = vmul.f32 %v390, %v398
      %v407 = vsub.f32 2.0, %v399
      %v408 = vsub.f32 2.0, %v400
      %v409 = vsub.f32 2.0, %v401
      %v410 = vsub.f32 2.0, %v402
      %v411 = vsub.f32 2.0, %v403
      %v412 = vsub.f32 2.0, %v404
      %v413 = vsub.f32 2.0, %v405
      %v414 = vsub.f32 2.0, %v406
      %v415 = vmul.f32 %v391, %v407
      %v416 = vmul.f32 %v392, %v408
      %v417 = vmul.f32 %v393, %v409
      %v418 = vmul.f32 %v394, %v410
      %v419 = vmul.f32 %v395, %v411
      %v420 = vmul.f32 %v396, %v412
      %v421 = vmul.f32 %v397, %v413
      %v422 = vmul.f32 %v398, %v414
      %v423 = vmul.f32 %v375, %v415
      %v424 = vmul.f32 %v376, %v416
      %v425 = vmul.f32 %v377, %v417
      %v426 = vmul.f32 %v378, %v418
      %v427 = vmul.f32 %v379, %v419
      %v428 = vmul.f32 %v380, %v420
      %v429 = vmul.f32 %v381, %v421
      %v430 = vmul.f32 %v382, %v422
      %vm431 = vcmp.ge.s32.totalorder %v235, 2
      %vm432 = vcmp.ge.s32.totalorder %v236, 2
      %vm433 = vcmp.lt.s32.totalorder %v235, 16
      %vm434 = vcmp.lt.s32.totalorder %v236, 16
      %vm435 = vmand %vm431, %vm433
      %vm436 = vmand %vm432, %vm434
      %v437 = vsel %vm435, 1, 0
      %v438 = vsel %vm436, 1, 0
      %v439 = vcvt.s32.f32 %v437
      %v440 = vcvt.s32.f32 %v438
      %v441 = vmul.f32 %v247, %v253
      %v442 = vmul.f32 %v248, %v253
      %v443 = vmul.f32 %v439, %v253
      %v444 = vmul.f32 %v440, %v253
      %v445 = vadd.f32 %v441, %v443
      %v446 = vadd.f32 %v442, %v444
      %v447 = vmul.f32 %v423, %v445
      %v448 = vmul.f32 %v424, %v446
      %v449 = vmul.f32 %v425, %v445
      %v450 = vmul.f32 %v426, %v446
      %v451 = vmul.f32 %v427, %v445
      %v452 = vmul.f32 %v428, %v446
      %v453 = vmul.f32 %v429, %v445
      %v454 = vmul.f32 %v430, %v446
      %v455 = vadd.f32 %v447, %v448
      %v456 = vadd.f32 %v455, %v449
      %v457 = vadd.f32 %v456, %v450
      %v458 = vadd.f32 %v457, %v451
      %v459 = vadd.f32 %v458, %v452
      %v460 = vadd.f32 %v459, %v453
      %v461 = vadd.f32 %v460, %v454
      %462 = vadd.xlane.f32.xlu0 %v461
      %v463 = vpop.xlane.xlu0 %462
      %v464 = vrot.slane %v463, 4
      %v465 = vadd.f32 %v463, %v464
      %v466 = vrot.slane %v465, 2
      %v467 = vadd.f32 %v465, %v466
      %v468 = vrot.slane %v467, 1
      %v469 = vadd.f32 %v467, %v468
      %s470 = vtos %v469
      %471 = vrot.lane.b32.xlu0 %v267, 1
      %v472 = vpop.permute.xlu0 %471
      %473 = vrot.lane.b32.xlu0 %v263, 1
      %v474 = vpop.permute.xlu0 %473
      %475 = vrot.lane.b32.xlu0 %v268, 1
      %v476 = vpop.permute.xlu0 %475
      %477 = vrot.lane.b32.xlu0 %v264, 1
      %v478 = vpop.permute.xlu0 %477
      %479 = vrot.lane.b32.xlu0 %v269, 1
      %v480 = vpop.permute.xlu0 %479
      %481 = vrot.lane.b32.xlu0 %v265, 1
      %v482 = vpop.permute.xlu0 %481
      %483 = vrot.lane.b32.xlu0 %v270, 1
      %v484 = vpop.permute.xlu0 %483
      %485 = vrot.lane.b32.xlu0 %v266, 1
      %v486 = vpop.permute.xlu0 %485
      %487 = vrot.lane.b32.xlu0 %v283, 1
      %v488 = vpop.permute.xlu0 %487
      %489 = vrot.lane.b32.xlu0 %v279, 1
      %v490 = vpop.permute.xlu0 %489
      %491 = vrot.lane.b32.xlu0 %v284, 1
      %v492 = vpop.permute.xlu0 %491
      %493 = vrot.lane.b32.xlu0 %v280, 1
      %v494 = vpop.permute.xlu0 %493
      %495 = vrot.lane.b32.xlu0 %v285, 1
      %v496 = vpop.permute.xlu0 %495
      %497 = vrot.lane.b32.xlu0 %v281, 1
      %v498 = vpop.permute.xlu0 %497
      %499 = vrot.lane.b32.xlu0 %v286, 1
      %v500 = vpop.permute.xlu0 %499
      %501 = vrot.lane.b32.xlu0 %v282, 1
      %v502 = vpop.permute.xlu0 %501
      %v503 = vsub.f32 %v472, %v218
      %v504 = vsub.f32 %v474, %v219
      %v505 = vsub.f32 %v476, %v220
      %v506 = vsub.f32 %v478, %v221
      %v507 = vsub.f32 %v480, %v222
      %v508 = vsub.f32 %v482, %v223
      %v509 = vsub.f32 %v484, %v224
      %v510 = vsub.f32 %v486, %v225
      %v511 = vsub.f32 %v488, %v226
      %v512 = vsub.f32 %v490, %v227
      %v513 = vsub.f32 %v492, %v228
      %v514 = vsub.f32 %v494, %v229
      %v515 = vsub.f32 %v496, %v230
      %v516 = vsub.f32 %v498, %v231
      %v517 = vsub.f32 %v500, %v232
      %v518 = vsub.f32 %v502, %v233
      %v519 = vmul.f32 %v503, %v503
      %v520 = vmul.f32 %v504, %v504
      %v521 = vmul.f32 %v505, %v505
      %v522 = vmul.f32 %v506, %v506
      %v523 = vmul.f32 %v507, %v507
      %v524 = vmul.f32 %v508, %v508
      %v525 = vmul.f32 %v509, %v509
      %v526 = vmul.f32 %v510, %v510
      %v527 = vadd.f32 %v519, 0.81
      %v528 = vadd.f32 %v520, 0.81
      %v529 = vadd.f32 %v521, 0.81
      %v530 = vadd.f32 %v522, 0.81
      %v531 = vadd.f32 %v523, 0.81
      %v532 = vadd.f32 %v524, 0.81
      %v533 = vadd.f32 %v525, 0.81
      %v534 = vadd.f32 %v526, 0.81
      %v535 = vrsqrt.pop %v527
      %v536 = vrsqrt.pop %v528
      %v537 = vrsqrt.pop %v529
      %v538 = vrsqrt.pop %v530
      %v539 = vrsqrt.pop %v531
      %v540 = vrsqrt.pop %v532
      %v541 = vrsqrt.pop %v533
      %v542 = vrsqrt.pop %v534
      %v543 = vmul.f32 %v503, %v535
      %v544 = vmul.f32 %v504, %v536
      %v545 = vmul.f32 %v505, %v537
      %v546 = vmul.f32 %v506, %v538
      %v547 = vmul.f32 %v507, %v539
      %v548 = vmul.f32 %v508, %v540
      %v549 = vmul.f32 %v509, %v541
      %v550 = vmul.f32 %v510, %v542
      %v551 = vmul.f32 %v511, %v511
      %v552 = vmul.f32 %v512, %v512
      %v553 = vmul.f32 %v513, %v513
      %v554 = vmul.f32 %v514, %v514
      %v555 = vmul.f32 %v515, %v515
      %v556 = vmul.f32 %v516, %v516
      %v557 = vmul.f32 %v517, %v517
      %v558 = vmul.f32 %v518, %v518
      %v559 = vadd.f32 %v551, 0.81
      %v560 = vadd.f32 %v552, 0.81
      %v561 = vadd.f32 %v553, 0.81
      %v562 = vadd.f32 %v554, 0.81
      %v563 = vadd.f32 %v555, 0.81
      %v564 = vadd.f32 %v556, 0.81
      %v565 = vadd.f32 %v557, 0.81
      %v566 = vadd.f32 %v558, 0.81
      %v567 = vrsqrt.pop %v559
      %v568 = vrsqrt.pop %v560
      %v569 = vrsqrt.pop %v561
      %v570 = vrsqrt.pop %v562
      %v571 = vrsqrt.pop %v563
      %v572 = vrsqrt.pop %v564
      %v573 = vrsqrt.pop %v565
      %v574 = vrsqrt.pop %v566
      %v575 = vmul.f32 %v511, %v567
      %v576 = vmul.f32 %v512, %v568
      %v577 = vmul.f32 %v513, %v569
      %v578 = vmul.f32 %v514, %v570
      %v579 = vmul.f32 %v515, %v571
      %v580 = vmul.f32 %v516, %v572
      %v581 = vmul.f32 %v517, %v573
      %v582 = vmul.f32 %v518, %v574
      %v583 = vsub.f32 %v543, %v575
      %v584 = vsub.f32 %v544, %v576
      %v585 = vsub.f32 %v545, %v577
      %v586 = vsub.f32 %v546, %v578
      %v587 = vsub.f32 %v547, %v579
      %v588 = vsub.f32 %v548, %v580
      %v589 = vsub.f32 %v549, %v581
      %v590 = vsub.f32 %v550, %v582
      %v591 = vmul.f32 %v583, %v583
      %v592 = vmul.f32 %v584, %v584
      %v593 = vmul.f32 %v585, %v585
      %v594 = vmul.f32 %v586, %v586
      %v595 = vmul.f32 %v587, %v587
      %v596 = vmul.f32 %v588, %v588
      %v597 = vmul.f32 %v589, %v589
      %v598 = vmul.f32 %v590, %v590
      %v599 = vadd.f32 %v591, 0.1
      %v600 = vadd.f32 %v592, 0.1
      %v601 = vadd.f32 %v593, 0.1
      %v602 = vadd.f32 %v594, 0.1
      %v603 = vadd.f32 %v595, 0.1
      %v604 = vadd.f32 %v596, 0.1
      %v605 = vadd.f32 %v597, 0.1
      %v606 = vadd.f32 %v598, 0.1
      %v607 = vrcp.pop %v599
      %v608 = vrcp.pop %v600
      %v609 = vrcp.pop %v601
      %v610 = vrcp.pop %v602
      %v611 = vrcp.pop %v603
      %v612 = vrcp.pop %v604
      %v613 = vrcp.pop %v605
      %v614 = vrcp.pop %v606
      %v615 = vmul.f32 %v599, %v607
      %v616 = vmul.f32 %v600, %v608
      %v617 = vmul.f32 %v601, %v609
      %v618 = vmul.f32 %v602, %v610
      %v619 = vmul.f32 %v603, %v611
      %v620 = vmul.f32 %v604, %v612
      %v621 = vmul.f32 %v605, %v613
      %v622 = vmul.f32 %v606, %v614
      %v623 = vsub.f32 2.0, %v615
      %v624 = vsub.f32 2.0, %v616
      %v625 = vsub.f32 2.0, %v617
      %v626 = vsub.f32 2.0, %v618
      %v627 = vsub.f32 2.0, %v619
      %v628 = vsub.f32 2.0, %v620
      %v629 = vsub.f32 2.0, %v621
      %v630 = vsub.f32 2.0, %v622
      %v631 = vmul.f32 %v607, %v623
      %v632 = vmul.f32 %v608, %v624
      %v633 = vmul.f32 %v609, %v625
      %v634 = vmul.f32 %v610, %v626
      %v635 = vmul.f32 %v611, %v627
      %v636 = vmul.f32 %v612, %v628
      %v637 = vmul.f32 %v613, %v629
      %v638 = vmul.f32 %v614, %v630
      %v639 = vmul.f32 %v591, %v631
      %v640 = vmul.f32 %v592, %v632
      %v641 = vmul.f32 %v593, %v633
      %v642 = vmul.f32 %v594, %v634
      %v643 = vmul.f32 %v595, %v635
      %v644 = vmul.f32 %v596, %v636
      %v645 = vmul.f32 %v597, %v637
      %v646 = vmul.f32 %v598, %v638
      %vm647 = vcmp.ge.s32.totalorder %v238, 2
      %vm648 = vcmp.lt.s32.totalorder %v238, 16
      %vm649 = vmand %vm647, %vm648
      %v650 = vsel %vm649, 1, 0
      %v651 = vcvt.s32.f32 %v650
      %v652 = vmul.f32 %v439, %v651
      %v653 = vmul.f32 %v440, %v651
      %v654 = vadd.f32 %v441, %v652
      %v655 = vadd.f32 %v442, %v653
      %v656 = vmul.f32 %v639, %v654
      %v657 = vmul.f32 %v640, %v655
      %v658 = vmul.f32 %v641, %v654
      %v659 = vmul.f32 %v642, %v655
      %v660 = vmul.f32 %v643, %v654
      %v661 = vmul.f32 %v644, %v655
      %v662 = vmul.f32 %v645, %v654
      %v663 = vmul.f32 %v646, %v655
      %v664 = vadd.f32 %v656, %v657
      %v665 = vadd.f32 %v664, %v658
      %v666 = vadd.f32 %v665, %v659
      %v667 = vadd.f32 %v666, %v660
      %v668 = vadd.f32 %v667, %v661
      %v669 = vadd.f32 %v668, %v662
      %v670 = vadd.f32 %v669, %v663
      %671 = vadd.xlane.f32.xlu0 %v670
      %v672 = vpop.xlane.xlu0 %671
      %v673 = vrot.slane %v672, 4
      %v674 = vadd.f32 %v672, %v673
      %v675 = vrot.slane %v674, 2
      %v676 = vadd.f32 %v674, %v675
      %v677 = vrot.slane %v676, 1
      %v678 = vadd.f32 %v676, %v677
      %s679 = vtos %v678
      %s680 = sadd.f32 %s470, %s679
      %681 = vrot.lane.b32.xlu0 %v267, 127
      %v682 = vpop.permute.xlu0 %681
      %683 = vrot.lane.b32.xlu0 %v263, 127
      %v684 = vpop.permute.xlu0 %683
      %685 = vrot.lane.b32.xlu0 %v268, 127
      %v686 = vpop.permute.xlu0 %685
      %687 = vrot.lane.b32.xlu0 %v264, 127
      %v688 = vpop.permute.xlu0 %687
      %689 = vrot.lane.b32.xlu0 %v269, 127
      %v690 = vpop.permute.xlu0 %689
      %691 = vrot.lane.b32.xlu0 %v265, 127
      %v692 = vpop.permute.xlu0 %691
      %693 = vrot.lane.b32.xlu0 %v270, 127
      %v694 = vpop.permute.xlu0 %693
      %695 = vrot.lane.b32.xlu0 %v266, 127
      %v696 = vpop.permute.xlu0 %695
      %697 = vrot.lane.b32.xlu0 %v283, 127
      %v698 = vpop.permute.xlu0 %697
      %699 = vrot.lane.b32.xlu0 %v279, 127
      %v700 = vpop.permute.xlu0 %699
      %701 = vrot.lane.b32.xlu0 %v284, 127
      %v702 = vpop.permute.xlu0 %701
      %703 = vrot.lane.b32.xlu0 %v280, 127
      %v704 = vpop.permute.xlu0 %703
      %705 = vrot.lane.b32.xlu0 %v285, 127
      %v706 = vpop.permute.xlu0 %705
      %707 = vrot.lane.b32.xlu0 %v281, 127
      %v708 = vpop.permute.xlu0 %707
      %709 = vrot.lane.b32.xlu0 %v286, 127
      %v710 = vpop.permute.xlu0 %709
      %711 = vrot.lane.b32.xlu0 %v282, 127
      %v712 = vpop.permute.xlu0 %711
      %v713 = vsub.f32 %v682, %v218
      %v714 = vsub.f32 %v684, %v219
      %v715 = vsub.f32 %v686, %v220
      %v716 = vsub.f32 %v688, %v221
      %v717 = vsub.f32 %v690, %v222
      %v718 = vsub.f32 %v692, %v223
      %v719 = vsub.f32 %v694, %v224
      %v720 = vsub.f32 %v696, %v225
      %v721 = vsub.f32 %v698, %v226
      %v722 = vsub.f32 %v700, %v227
      %v723 = vsub.f32 %v702, %v228
      %v724 = vsub.f32 %v704, %v229
      %v725 = vsub.f32 %v706, %v230
      %v726 = vsub.f32 %v708, %v231
      %v727 = vsub.f32 %v710, %v232
      %v728 = vsub.f32 %v712, %v233
      %v729 = vmul.f32 %v713, %v713
      %v730 = vmul.f32 %v714, %v714
      %v731 = vmul.f32 %v715, %v715
      %v732 = vmul.f32 %v716, %v716
      %v733 = vmul.f32 %v717, %v717
      %v734 = vmul.f32 %v718, %v718
      %v735 = vmul.f32 %v719, %v719
      %v736 = vmul.f32 %v720, %v720
      %v737 = vadd.f32 %v729, 0.81
      %v738 = vadd.f32 %v730, 0.81
      %v739 = vadd.f32 %v731, 0.81
      %v740 = vadd.f32 %v732, 0.81
      %v741 = vadd.f32 %v733, 0.81
      %v742 = vadd.f32 %v734, 0.81
      %v743 = vadd.f32 %v735, 0.81
      %v744 = vadd.f32 %v736, 0.81
      %v745 = vrsqrt.pop %v737
      %v746 = vrsqrt.pop %v738
      %v747 = vrsqrt.pop %v739
      %v748 = vrsqrt.pop %v740
      %v749 = vrsqrt.pop %v741
      %v750 = vrsqrt.pop %v742
      %v751 = vrsqrt.pop %v743
      %v752 = vrsqrt.pop %v744
      %v753 = vmul.f32 %v713, %v745
      %v754 = vmul.f32 %v714, %v746
      %v755 = vmul.f32 %v715, %v747
      %v756 = vmul.f32 %v716, %v748
      %v757 = vmul.f32 %v717, %v749
      %v758 = vmul.f32 %v718, %v750
      %v759 = vmul.f32 %v719, %v751
      %v760 = vmul.f32 %v720, %v752
      %v761 = vmul.f32 %v721, %v721
      %v762 = vmul.f32 %v722, %v722
      %v763 = vmul.f32 %v723, %v723
      %v764 = vmul.f32 %v724, %v724
      %v765 = vmul.f32 %v725, %v725
      %v766 = vmul.f32 %v726, %v726
      %v767 = vmul.f32 %v727, %v727
      %v768 = vmul.f32 %v728, %v728
      %v769 = vadd.f32 %v761, 0.81
      %v770 = vadd.f32 %v762, 0.81
      %v771 = vadd.f32 %v763, 0.81
      %v772 = vadd.f32 %v764, 0.81
      %v773 = vadd.f32 %v765, 0.81
      %v774 = vadd.f32 %v766, 0.81
      %v775 = vadd.f32 %v767, 0.81
      %v776 = vadd.f32 %v768, 0.81
      %v777 = vrsqrt.pop %v769
      %v778 = vrsqrt.pop %v770
      %v779 = vrsqrt.pop %v771
      %v780 = vrsqrt.pop %v772
      %v781 = vrsqrt.pop %v773
      %v782 = vrsqrt.pop %v774
      %v783 = vrsqrt.pop %v775
      %v784 = vrsqrt.pop %v776
      %v785 = vmul.f32 %v721, %v777
      %v786 = vmul.f32 %v722, %v778
      %v787 = vmul.f32 %v723, %v779
      %v788 = vmul.f32 %v724, %v780
      %v789 = vmul.f32 %v725, %v781
      %v790 = vmul.f32 %v726, %v782
      %v791 = vmul.f32 %v727, %v783
      %v792 = vmul.f32 %v728, %v784
      %v793 = vsub.f32 %v753, %v785
      %v794 = vsub.f32 %v754, %v786
      %v795 = vsub.f32 %v755, %v787
      %v796 = vsub.f32 %v756, %v788
      %v797 = vsub.f32 %v757, %v789
      %v798 = vsub.f32 %v758, %v790
      %v799 = vsub.f32 %v759, %v791
      %v800 = vsub.f32 %v760, %v792
      %v801 = vmul.f32 %v793, %v793
      %v802 = vmul.f32 %v794, %v794
      %v803 = vmul.f32 %v795, %v795
      %v804 = vmul.f32 %v796, %v796
      %v805 = vmul.f32 %v797, %v797
      %v806 = vmul.f32 %v798, %v798
      %v807 = vmul.f32 %v799, %v799
      %v808 = vmul.f32 %v800, %v800
      %v809 = vadd.f32 %v801, 0.1
      %v810 = vadd.f32 %v802, 0.1
      %v811 = vadd.f32 %v803, 0.1
      %v812 = vadd.f32 %v804, 0.1
      %v813 = vadd.f32 %v805, 0.1
      %v814 = vadd.f32 %v806, 0.1
      %v815 = vadd.f32 %v807, 0.1
      %v816 = vadd.f32 %v808, 0.1
      %v817 = vrcp.pop %v809
      %v818 = vrcp.pop %v810
      %v819 = vrcp.pop %v811
      %v820 = vrcp.pop %v812
      %v821 = vrcp.pop %v813
      %v822 = vrcp.pop %v814
      %v823 = vrcp.pop %v815
      %v824 = vrcp.pop %v816
      %v825 = vmul.f32 %v809, %v817
      %v826 = vmul.f32 %v810, %v818
      %v827 = vmul.f32 %v811, %v819
      %v828 = vmul.f32 %v812, %v820
      %v829 = vmul.f32 %v813, %v821
      %v830 = vmul.f32 %v814, %v822
      %v831 = vmul.f32 %v815, %v823
      %v832 = vmul.f32 %v816, %v824
      %v833 = vsub.f32 2.0, %v825
      %v834 = vsub.f32 2.0, %v826
      %v835 = vsub.f32 2.0, %v827
      %v836 = vsub.f32 2.0, %v828
      %v837 = vsub.f32 2.0, %v829
      %v838 = vsub.f32 2.0, %v830
      %v839 = vsub.f32 2.0, %v831
      %v840 = vsub.f32 2.0, %v832
      %v841 = vmul.f32 %v817, %v833
      %v842 = vmul.f32 %v818, %v834
      %v843 = vmul.f32 %v819, %v835
      %v844 = vmul.f32 %v820, %v836
      %v845 = vmul.f32 %v821, %v837
      %v846 = vmul.f32 %v822, %v838
      %v847 = vmul.f32 %v823, %v839
      %v848 = vmul.f32 %v824, %v840
      %v849 = vmul.f32 %v801, %v841
      %v850 = vmul.f32 %v802, %v842
      %v851 = vmul.f32 %v803, %v843
      %v852 = vmul.f32 %v804, %v844
      %v853 = vmul.f32 %v805, %v845
      %v854 = vmul.f32 %v806, %v846
      %v855 = vmul.f32 %v807, %v847
      %v856 = vmul.f32 %v808, %v848
      %vm857 = vcmp.ge.s32.totalorder %v238, 0
      %vm858 = vcmp.lt.s32.totalorder %v238, 14
      %vm859 = vmand %vm857, %vm858
      %v860 = vsel %vm859, 1, 0
      %v861 = vcvt.s32.f32 %v860
      %v862 = vmul.f32 %v439, %v861
      %v863 = vmul.f32 %v440, %v861
      %v864 = vadd.f32 %v441, %v862
      %v865 = vadd.f32 %v442, %v863
      %v866 = vmul.f32 %v849, %v864
      %v867 = vmul.f32 %v850, %v865
      %v868 = vmul.f32 %v851, %v864
      %v869 = vmul.f32 %v852, %v865
      %v870 = vmul.f32 %v853, %v864
      %v871 = vmul.f32 %v854, %v865
      %v872 = vmul.f32 %v855, %v864
      %v873 = vmul.f32 %v856, %v865
      %v874 = vadd.f32 %v866, %v867
      %v875 = vadd.f32 %v874, %v868
      %v876 = vadd.f32 %v875, %v869
      %v877 = vadd.f32 %v876, %v870
      %v878 = vadd.f32 %v877, %v871
      %v879 = vadd.f32 %v878, %v872
      %v880 = vadd.f32 %v879, %v873
      %881 = vadd.xlane.f32.xlu0 %v880
      %v882 = vpop.xlane.xlu0 %881
      %v883 = vrot.slane %v882, 4
      %v884 = vadd.f32 %v882, %v883
      %v885 = vrot.slane %v884, 2
      %v886 = vadd.f32 %v884, %v885
      %v887 = vrot.slane %v886, 1
      %v888 = vadd.f32 %v886, %v887
      %s889 = vtos %v888
      %s890 = sadd.f32 %s680, %s889
      %891 = vrot.lane.b32.xlu0 %v218, 1
      %v892 = vpop.permute.xlu0 %891
      %893 = vrot.lane.b32.xlu0 %v219, 1
      %v894 = vpop.permute.xlu0 %893
      %895 = vrot.lane.b32.xlu0 %v220, 1
      %v896 = vpop.permute.xlu0 %895
      %897 = vrot.lane.b32.xlu0 %v221, 1
      %v898 = vpop.permute.xlu0 %897
      %899 = vrot.lane.b32.xlu0 %v222, 1
      %v900 = vpop.permute.xlu0 %899
      %901 = vrot.lane.b32.xlu0 %v223, 1
      %v902 = vpop.permute.xlu0 %901
      %903 = vrot.lane.b32.xlu0 %v224, 1
      %v904 = vpop.permute.xlu0 %903
      %905 = vrot.lane.b32.xlu0 %v225, 1
      %v906 = vpop.permute.xlu0 %905
      %907 = vrot.lane.b32.xlu0 %v226, 1
      %v908 = vpop.permute.xlu0 %907
      %909 = vrot.lane.b32.xlu0 %v227, 1
      %v910 = vpop.permute.xlu0 %909
      %911 = vrot.lane.b32.xlu0 %v228, 1
      %v912 = vpop.permute.xlu0 %911
      %913 = vrot.lane.b32.xlu0 %v229, 1
      %v914 = vpop.permute.xlu0 %913
      %915 = vrot.lane.b32.xlu0 %v230, 1
      %v916 = vpop.permute.xlu0 %915
      %917 = vrot.lane.b32.xlu0 %v231, 1
      %v918 = vpop.permute.xlu0 %917
      %919 = vrot.lane.b32.xlu0 %v232, 1
      %v920 = vpop.permute.xlu0 %919
      %921 = vrot.lane.b32.xlu0 %v233, 1
      %v922 = vpop.permute.xlu0 %921
      %v923 = vsub.f32 %v892, %v218
      %v924 = vsub.f32 %v894, %v219
      %v925 = vsub.f32 %v896, %v220
      %v926 = vsub.f32 %v898, %v221
      %v927 = vsub.f32 %v900, %v222
      %v928 = vsub.f32 %v902, %v223
      %v929 = vsub.f32 %v904, %v224
      %v930 = vsub.f32 %v906, %v225
      %v931 = vsub.f32 %v908, %v226
      %v932 = vsub.f32 %v910, %v227
      %v933 = vsub.f32 %v912, %v228
      %v934 = vsub.f32 %v914, %v229
      %v935 = vsub.f32 %v916, %v230
      %v936 = vsub.f32 %v918, %v231
      %v937 = vsub.f32 %v920, %v232
      %v938 = vsub.f32 %v922, %v233
      %v939 = vmul.f32 %v923, %v923
      %v940 = vmul.f32 %v924, %v924
      %v941 = vmul.f32 %v925, %v925
      %v942 = vmul.f32 %v926, %v926
      %v943 = vmul.f32 %v927, %v927
      %v944 = vmul.f32 %v928, %v928
      %v945 = vmul.f32 %v929, %v929
      %v946 = vmul.f32 %v930, %v930
      %v947 = vadd.f32 %v939, 0.81
      %v948 = vadd.f32 %v940, 0.81
      %v949 = vadd.f32 %v941, 0.81
      %v950 = vadd.f32 %v942, 0.81
      %v951 = vadd.f32 %v943, 0.81
      %v952 = vadd.f32 %v944, 0.81
      %v953 = vadd.f32 %v945, 0.81
      %v954 = vadd.f32 %v946, 0.81
      %v955 = vrsqrt.pop %v947
      %v956 = vrsqrt.pop %v948
      %v957 = vrsqrt.pop %v949
      %v958 = vrsqrt.pop %v950
      %v959 = vrsqrt.pop %v951
      %v960 = vrsqrt.pop %v952
      %v961 = vrsqrt.pop %v953
      %v962 = vrsqrt.pop %v954
      %v963 = vmul.f32 %v923, %v955
      %v964 = vmul.f32 %v924, %v956
      %v965 = vmul.f32 %v925, %v957
      %v966 = vmul.f32 %v926, %v958
      %v967 = vmul.f32 %v927, %v959
      %v968 = vmul.f32 %v928, %v960
      %v969 = vmul.f32 %v929, %v961
      %v970 = vmul.f32 %v930, %v962
      %v971 = vmul.f32 %v931, %v931
      %v972 = vmul.f32 %v932, %v932
      %v973 = vmul.f32 %v933, %v933
      %v974 = vmul.f32 %v934, %v934
      %v975 = vmul.f32 %v935, %v935
      %v976 = vmul.f32 %v936, %v936
      %v977 = vmul.f32 %v937, %v937
      %v978 = vmul.f32 %v938, %v938
      %v979 = vadd.f32 %v971, 0.81
      %v980 = vadd.f32 %v972, 0.81
      %v981 = vadd.f32 %v973, 0.81
      %v982 = vadd.f32 %v974, 0.81
      %v983 = vadd.f32 %v975, 0.81
      %v984 = vadd.f32 %v976, 0.81
      %v985 = vadd.f32 %v977, 0.81
      %v986 = vadd.f32 %v978, 0.81
      %v987 = vrsqrt.pop %v979
      %v988 = vrsqrt.pop %v980
      %v989 = vrsqrt.pop %v981
      %v990 = vrsqrt.pop %v982
      %v991 = vrsqrt.pop %v983
      %v992 = vrsqrt.pop %v984
      %v993 = vrsqrt.pop %v985
      %v994 = vrsqrt.pop %v986
      %v995 = vmul.f32 %v931, %v987
      %v996 = vmul.f32 %v932, %v988
      %v997 = vmul.f32 %v933, %v989
      %v998 = vmul.f32 %v934, %v990
      %v999 = vmul.f32 %v935, %v991
      %v1000 = vmul.f32 %v936, %v992
      %v1001 = vmul.f32 %v937, %v993
      %v1002 = vmul.f32 %v938, %v994
      %v1003 = vsub.f32 %v963, %v995
      %v1004 = vsub.f32 %v964, %v996
      %v1005 = vsub.f32 %v965, %v997
      %v1006 = vsub.f32 %v966, %v998
      %v1007 = vsub.f32 %v967, %v999
      %v1008 = vsub.f32 %v968, %v1000
      %v1009 = vsub.f32 %v969, %v1001
      %v1010 = vsub.f32 %v970, %v1002
      %v1011 = vmul.f32 %v1003, %v1003
      %v1012 = vmul.f32 %v1004, %v1004
      %v1013 = vmul.f32 %v1005, %v1005
      %v1014 = vmul.f32 %v1006, %v1006
      %v1015 = vmul.f32 %v1007, %v1007
      %v1016 = vmul.f32 %v1008, %v1008
      %v1017 = vmul.f32 %v1009, %v1009
      %v1018 = vmul.f32 %v1010, %v1010
      %v1019 = vadd.f32 %v1011, 0.1
      %v1020 = vadd.f32 %v1012, 0.1
      %v1021 = vadd.f32 %v1013, 0.1
      %v1022 = vadd.f32 %v1014, 0.1
      %v1023 = vadd.f32 %v1015, 0.1
      %v1024 = vadd.f32 %v1016, 0.1
      %v1025 = vadd.f32 %v1017, 0.1
      %v1026 = vadd.f32 %v1018, 0.1
      %v1027 = vrcp.pop %v1019
      %v1028 = vrcp.pop %v1020
      %v1029 = vrcp.pop %v1021
      %v1030 = vrcp.pop %v1022
      %v1031 = vrcp.pop %v1023
      %v1032 = vrcp.pop %v1024
      %v1033 = vrcp.pop %v1025
      %v1034 = vrcp.pop %v1026
      %v1035 = vmul.f32 %v1019, %v1027
      %v1036 = vmul.f32 %v1020, %v1028
      %v1037 = vmul.f32 %v1021, %v1029
      %v1038 = vmul.f32 %v1022, %v1030
      %v1039 = vmul.f32 %v1023, %v1031
      %v1040 = vmul.f32 %v1024, %v1032
      %v1041 = vmul.f32 %v1025, %v1033
      %v1042 = vmul.f32 %v1026, %v1034
      %v1043 = vsub.f32 2.0, %v1035
      %v1044 = vsub.f32 2.0, %v1036
      %v1045 = vsub.f32 2.0, %v1037
      %v1046 = vsub.f32 2.0, %v1038
      %v1047 = vsub.f32 2.0, %v1039
      %v1048 = vsub.f32 2.0, %v1040
      %v1049 = vsub.f32 2.0, %v1041
      %v1050 = vsub.f32 2.0, %v1042
      %v1051 = vmul.f32 %v1027, %v1043
      %v1052 = vmul.f32 %v1028, %v1044
      %v1053 = vmul.f32 %v1029, %v1045
      %v1054 = vmul.f32 %v1030, %v1046
      %v1055 = vmul.f32 %v1031, %v1047
      %v1056 = vmul.f32 %v1032, %v1048
      %v1057 = vmul.f32 %v1033, %v1049
      %v1058 = vmul.f32 %v1034, %v1050
      %v1059 = vmul.f32 %v1011, %v1051
      %v1060 = vmul.f32 %v1012, %v1052
      %v1061 = vmul.f32 %v1013, %v1053
      %v1062 = vmul.f32 %v1014, %v1054
      %v1063 = vmul.f32 %v1015, %v1055
      %v1064 = vmul.f32 %v1016, %v1056
      %v1065 = vmul.f32 %v1017, %v1057
      %v1066 = vmul.f32 %v1018, %v1058
      %v1067 = vmul.f32 %v247, %v651
      %v1068 = vmul.f32 %v248, %v651
      %v1069 = vadd.f32 %v441, %v1067
      %v1070 = vadd.f32 %v442, %v1068
      %v1071 = vmul.f32 %v1059, %v1069
      %v1072 = vmul.f32 %v1060, %v1070
      %v1073 = vmul.f32 %v1061, %v1069
      %v1074 = vmul.f32 %v1062, %v1070
      %v1075 = vmul.f32 %v1063, %v1069
      %v1076 = vmul.f32 %v1064, %v1070
      %v1077 = vmul.f32 %v1065, %v1069
      %v1078 = vmul.f32 %v1066, %v1070
      %v1079 = vadd.f32 %v1071, %v1072
      %v1080 = vadd.f32 %v1079, %v1073
      %v1081 = vadd.f32 %v1080, %v1074
      %v1082 = vadd.f32 %v1081, %v1075
      %v1083 = vadd.f32 %v1082, %v1076
      %v1084 = vadd.f32 %v1083, %v1077
      %v1085 = vadd.f32 %v1084, %v1078
      %1086 = vadd.xlane.f32.xlu0 %v1085
      %v1087 = vpop.xlane.xlu0 %1086
      %v1088 = vrot.slane %v1087, 4
      %v1089 = vadd.f32 %v1087, %v1088
      %v1090 = vrot.slane %v1089, 2
      %v1091 = vadd.f32 %v1089, %v1090
      %v1092 = vrot.slane %v1091, 1
      %v1093 = vadd.f32 %v1091, %v1092
      %s1094 = vtos %v1093
      %s1095 = sadd.f32 %s890, %s1094
      %v1096 = vstv %s1095
      %1097 = vst [vmem:[%s217] sm:$0x1] %v1096
      %p1098 = scmp.lt.s32.totalorder %s17, 1
      %s1099 = scalar_select %p1098, %s17, 1
      %p1100 = scmp.lt.s32.totalorder %s18, 0
      %s1101 = scalar_select %p1100, %s18, 0
      %s1102 = sadd.s32 %s1101, %s1099
      %s1103 = scalar_lea.vmem %s2, %s1102
      // Predicated region
      $region29: #{geometry_loss.1} parent=27 // pred_check
        %p1104 = pneg %p101
      $region30: #{geometry_loss.1} parent=27 // pred_check_branch
        %1106 = sbr.rel (%p1104) target = $region32
      $region31: #{geometry_loss.1} parent=27 // pred_region
        _
      $region32: #{geometry_loss.1} parent=27 // pred_fallthru
        _
    $region28: #{geometry_loss.1} parent=5 // pred_fallthru
      _
    %p1107 = scmp.le.s32.totalorder 2, %s8
    // Predicated region
    $region33: #{geometry_loss.1} parent=5 // pred_check
      %p1108 = pneg %p1107
    $region34: #{geometry_loss.1} parent=5 // pred_check_branch
      %1110 = sbr.rel (%p1108) target = $region36
    $region35: #{geometry_loss.1} parent=5 // pred_region
      %s1111 = ssub.s32 %s8, 2
      // Predicated region
      $region37: #{geometry_loss.1} parent=35 // pred_check
        %p1112 = pneg %p107
      $region38: #{geometry_loss.1} parent=35 // pred_check_branch
        %1114 = sbr.rel (%p1112) target = $region40
      $region39: #{geometry_loss.1} parent=35 // pred_region
        %p1115 = scmp.lt.s32.totalorder %s19, 1
        %s1116 = scalar_select %p1115, %s19, 1
        %p1117 = scmp.lt.s32.totalorder %s20, 0
        %s1118 = scalar_select %p1117, %s20, 0
        %s1119 = sadd.s32 %s1118, %s1116
        %s1120 = scalar_lea.vmem %s2, %s1119
      $region40: #{geometry_loss.1} parent=35 // pred_fallthru
        _
    $region36: #{geometry_loss.1} parent=5 // pred_fallthru
      _
  $region6: #{geometry_loss.1} parent=0 // loop_footer
    %s12 = sadd.s32 1, %s8
  $region7: #{geometry_loss.1} parent=0 // loop_footer_branch
    %7 = sbr.rel target = $region3
  $region8: #{geometry_loss.1} parent=0 // loop_exit
    _

</llo_original>
